<compile_context>
chip_gen: v7x
topology: tpu7x:2x2x1
jax: 0.10.0
libtpu: 0.0.40
codegen_flags: <defaults>
</compile_context>

<pallas_src>
import functools

import jax
import jax.numpy as jnp
from jax.experimental import pallas as pl
from jax.experimental.pallas import tpu as pltpu

MARGIN = 0.2          # module __init__ default
_BALL_EPS = 1e-5      # geoopt Artanh clamp (float32)
_DENOM_EPS = 1e-15    # geoopt mobius_add denom clamp_min


# ---------------------------------------------------------------------------
# Pure-jnp geoopt-style implementation (tiny-size fallback + test reference).
# ---------------------------------------------------------------------------
def _dist_poincare(x, y):
    x2 = jnp.sum(x * x, axis=-1, keepdims=True)
    y2 = jnp.sum(y * y, axis=-1, keepdims=True)
    xy = jnp.sum(x * y, axis=-1, keepdims=True)
    num = (1.0 - 2.0 * xy + y2) * (-x) + (1.0 - x2) * y
    denom = jnp.maximum(1.0 - 2.0 * xy + x2 * y2, _DENOM_EPS)
    m = num / denom
    nrm = jnp.sqrt(jnp.sum(m * m, axis=-1, keepdims=True))
    z = jnp.clip(nrm, -1.0 + _BALL_EPS, 1.0 - _BALL_EPS)
    return (jnp.log1p(z) - jnp.log1p(-z))[..., 0]     # 2 * artanh(z)


def _htriplet_jnp(a, p, n, margin=MARGIN):
    d_ap = _dist_poincare(a, p)
    d_an = _dist_poincare(a, n)
    return jnp.mean(jnp.maximum(d_ap - d_an + margin, 0.0))


# ---------------------------------------------------------------------------
# Pallas kernel
# ---------------------------------------------------------------------------
def _htriplet_kernel(a_ref, p_ref, n_ref, out_ref, *, batch, tile_b, margin):
    """One batch tile: (TB, D) blocks of a/p/n -> masked partial hinge sum."""
    g = pl.program_id(0)

    # Blocks arrive in natural (batch, feature) layout; transpose on the XLU
    # so per-sample scalars are lane-dense (1, TB) rows.  All math stays f32.
    a = a_ref[...].astype(jnp.float32).T      # (D, TB)
    p = p_ref[...].astype(jnp.float32).T
    n = n_ref[...].astype(jnp.float32).T

    u = jnp.sum(a * a, axis=0, keepdims=True)     # ||a||^2, shared, (1, TB)
    beta = 1.0 - u

    def dist(y):
        # PoincareBall(c=1).dist(a, y) for every sample in the tile.
        v = jnp.sum(y * y, axis=0, keepdims=True)           # ||y||^2
        w = jnp.sum(a * y, axis=0, keepdims=True)           # <a, y>
        diff = a - y
        d2 = jnp.sum(diff * diff, axis=0, keepdims=True)    # ||a - y||^2
        # ||mobius_add(-a, y)||^2 = d2 * (beta^2 + 2*beta*<a, a-y> + u*d2)
        # Exact rewrite of alpha^2*u - 2*alpha*beta*w + beta^2*v; computing d2
        # from the difference avoids catastrophic cancellation when a ~= y.
        xd = u - w                                          # <a, a - y>
        bracket = beta * beta + 2.0 * beta * xd + u * d2
        num_sq = jnp.maximum(d2 * bracket, 0.0)             # guard fp rounding
        denom = jnp.maximum(1.0 - 2.0 * w + u * v, _DENOM_EPS)
        nrm = jnp.sqrt(num_sq) / denom
        z = jnp.minimum(nrm, 1.0 - _BALL_EPS)               # nrm >= 0
        return jnp.log1p(z) - jnp.log1p(-z)                 # 2 * artanh(z)

    d_ap = dist(p)                                          # (1, TB)
    d_an = dist(n)                                          # (1, TB)
    hinge = jnp.maximum(d_ap - d_an + margin, 0.0)          # (1, TB)

    # Mask out-of-range lanes of the (possibly ragged) last tile in-kernel.
    lane = jax.lax.broadcasted_iota(jnp.int32, hinge.shape, 1)
    hinge = jnp.where(g * tile_b + lane < batch, hinge, 0.0)

    # Per-tile partial sum, broadcast over this step's own (8, 128) output
    # block (no cross-iteration accumulator -> grid axis stays "parallel").
    out_ref[...] = jnp.full(out_ref.shape, jnp.sum(hinge), dtype=jnp.float32)


# ---------------------------------------------------------------------------
# Tiling / VMEM policy
# ---------------------------------------------------------------------------
def _round_up(x, m):
    return -(-int(x) // m) * m


def _round_tile(tb):
    if tb >= 128:
        return (tb // 128) * 128
    return max(8, (tb // 8) * 8)


def _vmem_capacity_bytes():
    try:
        info = pltpu.get_tpu_info()
        return int(getattr(info, "vmem_capacity_bytes", 64 * 1024 * 1024))
    except Exception:
        return 64 * 1024 * 1024   # conservative (v7x-sized) fallback


def _choose_tile_b(dim, itemsize):
    """Batch-tile size: big enough to amortize per-step overhead, small
    enough that double-buffered blocks + f32/transposed work copies fit the
    generation's VMEM (~21 MiB budget on v7x, ~42 MiB on v5e/v6e)."""
    cap = _vmem_capacity_bytes()
    block_budget = min(cap // 3, 48 * 1024 * 1024)
    # 2x double-buffered input blocks (3 arrays) + ~10 f32 block-sized
    # temporaries (f32 copies, transposes, products) per sample per step.
    per_sample = dim * (2 * 3 * itemsize + 10 * 4)
    tb_vmem = max(8, block_budget // per_sample)
    # >= ~3 MiB of raw input per grid step (per-step overhead ~0.35 us).
    tb_payload = max(1024, (3 * 1024 * 1024) // (3 * dim * itemsize))
    return _round_tile(min(tb_vmem, tb_payload)), int(tb_vmem)


# ---------------------------------------------------------------------------
# Public entry point
# ---------------------------------------------------------------------------
def h_triplet_loss(a, p, n, margin=MARGIN, tile_b=None, use_pallas=None):
    """Scalar hyperbolic triplet loss.  a, p, n: (B, D) float32 (or bf16)."""
    B, D = a.shape
    itemsize = jnp.dtype(a.dtype).itemsize

    if use_pallas is None:
        # Tiny problems: fixed pallas_call overhead dominates -> fused jnp.
        use_pallas = 3 * B * D * itemsize >= (64 << 10)
    if not use_pallas:
        return _htriplet_jnp(a, p, n, margin)

    tb_auto, tb_vmem = _choose_tile_b(D, itemsize)
    if tile_b is None:
        tb = tb_auto
        # v7x megacore: make sure the "parallel" grid axis has >= 2 steps.
        if B > 256:
            tb = min(tb, _round_up(-(-B // 2), 128))
    else:
        tb = _round_tile(max(8, min(int(tile_b), tb_vmem)))
    if tb >= B:
        tb = B                          # single full-extent block (always legal)

    G = -(-B // tb)                     # cdiv; last tile masked in-kernel

    kernel = functools.partial(_htriplet_kernel,
                               batch=B, tile_b=tb, margin=float(margin))

    cap = _vmem_capacity_bytes()
    partials = pl.pallas_call(
        kernel,
        out_shape=jax.ShapeDtypeStruct((8, G * 128), jnp.float32),
        grid=(G,),
        in_specs=[
            pl.BlockSpec((tb, D), lambda g: (g, 0)),
            pl.BlockSpec((tb, D), lambda g: (g, 0)),
            pl.BlockSpec((tb, D), lambda g: (g, 0)),
        ],
        out_specs=pl.BlockSpec((8, 128), lambda g: (0, g)),
        compiler_params=pltpu.CompilerParams(
            dimension_semantics=("parallel",),
            vmem_limit_bytes=int(min(cap // 2, 64 * 1024 * 1024)),
        ),
    )(a, p, n)

    # Each tile broadcast its partial sum over its own (8, 128) block; finish
    # the tiny G-element reduce + mean here (padded lanes already masked).
    return jnp.sum(partials[0, ::128]) / B


# ---------------------------------------------------------------------------
# Tests
# ---------------------------------------------------------------------------
if __name__ == "__main__":
    key = jax.random.PRNGKey(0)

    def sample_in_ball(k, b, d):
        v = jax.random.normal(k, (b, d), jnp.float32)
        nrm = jnp.linalg.norm(v, axis=-1, keepdims=True)
        return 0.5 * v / (1.0 + nrm)      # strictly inside the unit ball

    # Test 1: module-scale small shape (B=8 triplets, D=16) — force the
    # Pallas path (single (8, 16) block) and check vs the geoopt reference.
    ka, kp, kn = jax.random.split(key, 3)
    a1 = sample_in_ball(ka, 8, 16)
    p1 = sample_in_ball(kp, 8, 16)
    n1 = sample_in_ball(kn, 8, 16)
    loss1 = h_triplet_loss(a1, p1, n1, use_pallas=True)
    jax.block_until_ready(loss1)
    ref1 = _htriplet_jnp(a1, p1, n1)
    assert jnp.allclose(loss1, ref1, rtol=1e-4, atol=1e-6), (loss1, ref1)

    # Test 2: multi-tile path with a ragged, in-kernel-masked last tile
    # (B=300 > 256 -> two grid steps of TB=256 on the "parallel" axis).
    kb, kq, km = jax.random.split(jax.random.PRNGKey(1), 3)
    a2 = sample_in_ball(kb, 300, 64)
    p2 = sample_in_ball(kq, 300, 64)
    n2 = sample_in_ball(km, 300, 64)
    loss2 = h_triplet_loss(a2, p2, n2)
    jax.block_until_ready(loss2)
    ref2 = _htriplet_jnp(a2, p2, n2)
    assert jnp.allclose(loss2, ref2, rtol=1e-4, atol=1e-6), (loss2, ref2)

    # Test 3: tiny-problem gate falls back to the fused jnp path.
    loss3 = h_triplet_loss(a1[:4, :8], p1[:4, :8], n1[:4, :8])
    jax.block_until_ready(loss3)
    assert bool(jnp.isfinite(loss3))

    print("KERNEL_OK")
</pallas_src>

<mosaic_0001>
module attributes {stable_mosaic.version = 11 : i64} {
  func.func @_htriplet_kernel(%arg0: i32, %arg1: memref<8x16xf32, #tpu.memory_space<vmem>>, %arg2: memref<8x16xf32, #tpu.memory_space<vmem>>, %arg3: memref<8x16xf32, #tpu.memory_space<vmem>>, %arg4: memref<8x128xf32, #tpu.memory_space<vmem>>) attributes {dimension_semantics = [#tpu.dimension_semantics<parallel>], iteration_bounds = array<i64: 1>, scalar_prefetch = 0 : i64, scratch_operands = 0 : i64, tpu.core_type = #tpu.core_type<tc>, window_params = [{transform_indices = @transform_0, window_bounds = array<i64: 8, 16>}, {transform_indices = @transform_1, window_bounds = array<i64: 8, 16>}, {transform_indices = @transform_2, window_bounds = array<i64: 8, 16>}, {transform_indices = @transform_3, window_bounds = array<i64: 8, 128>}]} {
    %c0 = arith.constant 0 : index
    %c0_0 = arith.constant 0 : index
    %0 = vector.load %arg1[%c0, %c0_0] : memref<8x16xf32, #tpu.memory_space<vmem>>, vector<8x16xf32>
    %1 = tpu.transpose %0, [1, 0] : vector<8x16xf32> -> vector<16x8xf32>
    %c0_1 = arith.constant 0 : index
    %c0_2 = arith.constant 0 : index
    %2 = vector.load %arg2[%c0_1, %c0_2] : memref<8x16xf32, #tpu.memory_space<vmem>>, vector<8x16xf32>
    %3 = tpu.transpose %2, [1, 0] : vector<8x16xf32> -> vector<16x8xf32>
    %c0_3 = arith.constant 0 : index
    %c0_4 = arith.constant 0 : index
    %4 = vector.load %arg3[%c0_3, %c0_4] : memref<8x16xf32, #tpu.memory_space<vmem>>, vector<8x16xf32>
    %5 = tpu.transpose %4, [1, 0] : vector<8x16xf32> -> vector<16x8xf32>
    %6 = arith.mulf %1, %1 : vector<16x8xf32>
    %cst = arith.constant dense<0.000000e+00> : vector<8xf32>
    %7 = vector.multi_reduction <add>, %6, %cst [0] : vector<16x8xf32> to vector<8xf32>
    %8 = vector.shape_cast %7 : vector<8xf32> to vector<1x8xf32>
    %cst_5 = arith.constant 1.000000e+00 : f32
    %9 = vector.broadcast %cst_5 : f32 to vector<1x8xf32>
    %10 = arith.subf %9, %8 : vector<1x8xf32>
    %11 = arith.mulf %3, %3 : vector<16x8xf32>
    %cst_6 = arith.constant dense<0.000000e+00> : vector<8xf32>
    %12 = vector.multi_reduction <add>, %11, %cst_6 [0] : vector<16x8xf32> to vector<8xf32>
    %13 = vector.shape_cast %12 : vector<8xf32> to vector<1x8xf32>
    %14 = arith.mulf %1, %3 : vector<16x8xf32>
    %cst_7 = arith.constant dense<0.000000e+00> : vector<8xf32>
    %15 = vector.multi_reduction <add>, %14, %cst_7 [0] : vector<16x8xf32> to vector<8xf32>
    %16 = vector.shape_cast %15 : vector<8xf32> to vector<1x8xf32>
    %17 = arith.subf %1, %3 : vector<16x8xf32>
    %18 = arith.mulf %17, %17 : vector<16x8xf32>
    %cst_8 = arith.constant dense<0.000000e+00> : vector<8xf32>
    %19 = vector.multi_reduction <add>, %18, %cst_8 [0] : vector<16x8xf32> to vector<8xf32>
    %20 = vector.shape_cast %19 : vector<8xf32> to vector<1x8xf32>
    %21 = arith.subf %8, %16 : vector<1x8xf32>
    %22 = arith.mulf %10, %10 : vector<1x8xf32>
    %cst_9 = arith.constant 2.000000e+00 : f32
    %23 = vector.broadcast %cst_9 : f32 to vector<1x8xf32>
    %24 = arith.mulf %23, %10 : vector<1x8xf32>
    %25 = arith.mulf %24, %21 : vector<1x8xf32>
    %26 = arith.addf %22, %25 : vector<1x8xf32>
    %27 = arith.mulf %8, %20 : vector<1x8xf32>
    %28 = arith.addf %26, %27 : vector<1x8xf32>
    %29 = arith.mulf %20, %28 : vector<1x8xf32>
    %cst_10 = arith.constant 0.000000e+00 : f32
    %30 = vector.broadcast %cst_10 : f32 to vector<1x8xf32>
    %31 = arith.maximumf %29, %30 : vector<1x8xf32>
    %cst_11 = arith.constant 2.000000e+00 : f32
    %32 = vector.broadcast %cst_11 : f32 to vector<1x8xf32>
    %33 = arith.mulf %32, %16 : vector<1x8xf32>
    %cst_12 = arith.constant 1.000000e+00 : f32
    %34 = vector.broadcast %cst_12 : f32 to vector<1x8xf32>
    %35 = arith.subf %34, %33 : vector<1x8xf32>
    %36 = arith.mulf %8, %13 : vector<1x8xf32>
    %37 = arith.addf %35, %36 : vector<1x8xf32>
    %cst_13 = arith.constant 1.000000e-15 : f32
    %38 = vector.broadcast %cst_13 : f32 to vector<1x8xf32>
    %39 = arith.maximumf %37, %38 : vector<1x8xf32>
    %40 = math.sqrt %31 : vector<1x8xf32>
    %41 = arith.divf %40, %39 : vector<1x8xf32>
    %cst_14 = arith.constant 0.999989986 : f32
    %42 = vector.broadcast %cst_14 : f32 to vector<1x8xf32>
    %43 = arith.minimumf %41, %42 : vector<1x8xf32>
    %44 = math.log1p %43 : vector<1x8xf32>
    %cst_15 = arith.constant 0.000000e+00 : f32
    %45 = vector.broadcast %cst_15 : f32 to vector<1x8xf32>
    %46 = arith.subf %45, %43 : vector<1x8xf32>
    %47 = math.log1p %46 : vector<1x8xf32>
    %48 = arith.subf %44, %47 : vector<1x8xf32>
    %49 = arith.mulf %5, %5 : vector<16x8xf32>
    %cst_16 = arith.constant dense<0.000000e+00> : vector<8xf32>
    %50 = vector.multi_reduction <add>, %49, %cst_16 [0] : vector<16x8xf32> to vector<8xf32>
    %51 = vector.shape_cast %50 : vector<8xf32> to vector<1x8xf32>
    %52 = arith.mulf %1, %5 : vector<16x8xf32>
    %cst_17 = arith.constant dense<0.000000e+00> : vector<8xf32>
    %53 = vector.multi_reduction <add>, %52, %cst_17 [0] : vector<16x8xf32> to vector<8xf32>
    %54 = vector.shape_cast %53 : vector<8xf32> to vector<1x8xf32>
    %55 = arith.subf %1, %5 : vector<16x8xf32>
    %56 = arith.mulf %55, %55 : vector<16x8xf32>
    %cst_18 = arith.constant dense<0.000000e+00> : vector<8xf32>
    %57 = vector.multi_reduction <add>, %56, %cst_18 [0] : vector<16x8xf32> to vector<8xf32>
    %58 = vector.shape_cast %57 : vector<8xf32> to vector<1x8xf32>
    %59 = arith.subf %8, %54 : vector<1x8xf32>
    %60 = arith.mulf %10, %10 : vector<1x8xf32>
    %cst_19 = arith.constant 2.000000e+00 : f32
    %61 = vector.broadcast %cst_19 : f32 to vector<1x8xf32>
    %62 = arith.mulf %61, %10 : vector<1x8xf32>
    %63 = arith.mulf %62, %59 : vector<1x8xf32>
    %64 = arith.addf %60, %63 : vector<1x8xf32>
    %65 = arith.mulf %8, %58 : vector<1x8xf32>
    %66 = arith.addf %64, %65 : vector<1x8xf32>
    %67 = arith.mulf %58, %66 : vector<1x8xf32>
    %cst_20 = arith.constant 0.000000e+00 : f32
    %68 = vector.broadcast %cst_20 : f32 to vector<1x8xf32>
    %69 = arith.maximumf %67, %68 : vector<1x8xf32>
    %cst_21 = arith.constant 2.000000e+00 : f32
    %70 = vector.broadcast %cst_21 : f32 to vector<1x8xf32>
    %71 = arith.mulf %70, %54 : vector<1x8xf32>
    %cst_22 = arith.constant 1.000000e+00 : f32
    %72 = vector.broadcast %cst_22 : f32 to vector<1x8xf32>
    %73 = arith.subf %72, %71 : vector<1x8xf32>
    %74 = arith.mulf %8, %51 : vector<1x8xf32>
    %75 = arith.addf %73, %74 : vector<1x8xf32>
    %cst_23 = arith.constant 1.000000e-15 : f32
    %76 = vector.broadcast %cst_23 : f32 to vector<1x8xf32>
    %77 = arith.maximumf %75, %76 : vector<1x8xf32>
    %78 = math.sqrt %69 : vector<1x8xf32>
    %79 = arith.divf %78, %77 : vector<1x8xf32>
    %cst_24 = arith.constant 0.999989986 : f32
    %80 = vector.broadcast %cst_24 : f32 to vector<1x8xf32>
    %81 = arith.minimumf %79, %80 : vector<1x8xf32>
    %82 = math.log1p %81 : vector<1x8xf32>
    %cst_25 = arith.constant 0.000000e+00 : f32
    %83 = vector.broadcast %cst_25 : f32 to vector<1x8xf32>
    %84 = arith.subf %83, %81 : vector<1x8xf32>
    %85 = math.log1p %84 : vector<1x8xf32>
    %86 = arith.subf %82, %85 : vector<1x8xf32>
    %87 = arith.subf %48, %86 : vector<1x8xf32>
    %cst_26 = arith.constant 2.000000e-01 : f32
    %88 = vector.broadcast %cst_26 : f32 to vector<1x8xf32>
    %89 = arith.addf %87, %88 : vector<1x8xf32>
    %cst_27 = arith.constant 0.000000e+00 : f32
    %90 = vector.broadcast %cst_27 : f32 to vector<1x8xf32>
    %91 = arith.maximumf %89, %90 : vector<1x8xf32>
    %92 = tpu.iota {dimensions = array<i32: 1>} : vector<1x8xi32>
    %c8_i32 = arith.constant 8 : i32
    %93 = arith.muli %arg0, %c8_i32 : i32
    %94 = vector.broadcast %93 : i32 to vector<1x8xi32>
    %95 = arith.addi %94, %92 : vector<1x8xi32>
    %c8_i32_28 = arith.constant 8 : i32
    %96 = vector.broadcast %c8_i32_28 : i32 to vector<1x8xi32>
    %97 = arith.cmpi slt, %95, %96 : vector<1x8xi32>
    %cst_29 = arith.constant 0.000000e+00 : f32
    %98 = vector.broadcast %cst_29 : f32 to vector<1x8xf32>
    %99 = arith.select %97, %91, %98 : vector<1x8xi1>, vector<1x8xf32>
    %100 = vector.shape_cast %99 : vector<1x8xf32> to vector<1x1x8xf32>
    %cst_30 = arith.constant dense<0.000000e+00> : vector<1xf32>
    %101 = vector.multi_reduction <add>, %100, %cst_30 [1, 2] : vector<1x1x8xf32> to vector<1xf32>
    %102 = vector.shape_cast %101 : vector<1xf32> to vector<1x1x1xf32>
    %103 = vector.extract %102[0, 0, 0] : f32 from vector<1x1x1xf32>
    %104 = vector.broadcast %103 : f32 to vector<8x128xf32>
    %c0_31 = arith.constant 0 : index
    %c0_32 = arith.constant 0 : index
    %105 = vector.load %arg4[%c0_31, %c0_32] : memref<8x128xf32, #tpu.memory_space<vmem>>, vector<8x128xf32>
    tpu.vector_store %arg4[%c0_31, %c0_32], %104 {strides = array<i32>} : memref<8x128xf32, #tpu.memory_space<vmem>>, vector<8x128xf32>,
    return
  }
  func.func @transform_0(%arg0: i32) -> (i32, i32) {
    %c0_i32 = arith.constant 0 : i32
    %c0_i32_0 = arith.constant 0 : i32
    return %arg0, %c0_i32 : i32, i32
  }
  func.func @transform_1(%arg0: i32) -> (i32, i32) {
    %c0_i32 = arith.constant 0 : i32
    %c0_i32_0 = arith.constant 0 : i32
    return %arg0, %c0_i32 : i32, i32
  }
  func.func @transform_2(%arg0: i32) -> (i32, i32) {
    %c0_i32 = arith.constant 0 : i32
    %c0_i32_0 = arith.constant 0 : i32
    return %arg0, %c0_i32 : i32, i32
  }
  func.func @transform_3(%arg0: i32) -> (i32, i32) {
    %c0_i32 = arith.constant 0 : i32
    %c0_i32_0 = arith.constant 0 : i32
    return %c0_i32, %arg0 : i32, i32
  }
}

</mosaic_0001>

<llo_original>
// kernel: tpu_custom_call.1
$region0: #{tpu_custom_call.1}
  #allocation0 [shape = 'u32[]', space=smem, size = 0x4, offset = 0x4, fixed_abs, tag = 'smem constant byte address 0x4 - core index']
  #allocation1 [shape = 'u32[144,128]{1,0:T(1,128)}', space=vmem, size = 0x12000, scoped, tag = 'internal scratch']
  %s0 = inlined_call_operand.hbm [shape: f32[8,16], index: 0, kind: input, shape index: {}]
  %s1 = inlined_call_operand.hbm [shape: f32[8,16], index: 1, kind: input, shape index: {}]
  %s2 = inlined_call_operand.hbm [shape: f32[8,16], index: 2, kind: input, shape index: {}]
  %s3 = inlined_call_operand.hbm [shape: f32[8,128], index: 3, kind: output, shape index: {}]
  %s4 = sld [smem:[#allocation0]]
  $region34: #{tpu_custom_call.1} parent=0
    _
  %s6 = ssub.s32 1, %s4
  %s7 = scalar_select 0, %s6, %s4
  $region1: #{tpu_custom_call.1} parent=0
    #allocation2 [shape = 'u8[4096]{0}', space=vmem, size = 0x1000, scoped, tag = 'input window, operand 0, single buffered']
    #allocation3 [shape = 's32[1]{0}', space=sflag, size = 0x4, scoped, tag = 'scoped memory for tpu_custom_call.1']
    #allocation4 [shape = 's32[1]{0}', space=sflag, size = 0x4, scoped, tag = 'scoped memory for tpu_custom_call.1']
    #allocation5 [shape = 'u8[4096]{0}', space=vmem, size = 0x1000, scoped, tag = 'input window, operand 1, single buffered']
    #allocation6 [shape = 's32[1]{0}', space=sflag, size = 0x4, scoped, tag = 'scoped memory for tpu_custom_call.1']
    #allocation7 [shape = 'u8[4096]{0}', space=vmem, size = 0x1000, scoped, tag = 'input window, operand 2, single buffered']
    #allocation8 [shape = 'u8[4096]{0}', space=vmem, size = 0x1000, scoped, tag = 'output window, operand 0, single buffered']
    %8 = vsyncpa [#allocation3], 0
    %9 = vsyncpa [#allocation6], 0
    %10 = vsyncpa [#allocation4], 0
    // Predicated region
    $region2: #{tpu_custom_call.1} parent=1 // pred_check
      _
    $region3: #{tpu_custom_call.1} parent=1 // pred_check_branch
      %12 = sbr.rel (0) target = $region5
    $region4: #{tpu_custom_call.1} parent=1 // pred_region
      %s14 = ssub.s32 128, 128
      %15 = vsyncadd [#allocation3], %s14
      %s17 = sshll.u32 [#allocation2], 4
      %s18 = int_to_ptr.vmem [resolvable:$true] %s17
      %20 = dma.hbm_to_vmem [thread:$0]  %s0, 128, %s18, [#allocation3]
    $region5: #{tpu_custom_call.1} parent=1 // pred_fallthru
      _
    // Predicated region
    $region6: #{tpu_custom_call.1} parent=1 // pred_check
      _
    $region7: #{tpu_custom_call.1} parent=1 // pred_check_branch
      %22 = sbr.rel (0) target = $region9
    $region8: #{tpu_custom_call.1} parent=1 // pred_region
      %s24 = ssub.s32 128, 128
      %25 = vsyncadd [#allocation6], %s24
      %s27 = sshll.u32 [#allocation5], 4
      %s28 = int_to_ptr.vmem [resolvable:$true] %s27
      %30 = dma.hbm_to_vmem [thread:$0]  %s1, 128, %s28, [#allocation6]
    $region9: #{tpu_custom_call.1} parent=1 // pred_fallthru
      _
    // Predicated region
    $region10: #{tpu_custom_call.1} parent=1 // pred_check
      _
    $region11: #{tpu_custom_call.1} parent=1 // pred_check_branch
      %32 = sbr.rel (0) target = $region13
    $region12: #{tpu_custom_call.1} parent=1 // pred_region
      %s34 = ssub.s32 128, 128
      %35 = vsyncadd [#allocation6], %s34
      %s37 = sshll.u32 [#allocation7], 4
      %s38 = int_to_ptr.vmem [resolvable:$true] %s37
      %40 = dma.hbm_to_vmem [thread:$0]  %s2, 128, %s38, [#allocation6]
    $region13: #{tpu_custom_call.1} parent=1 // pred_fallthru
      _
    // Predicated region
    $region14: #{tpu_custom_call.1} parent=1 // pred_check
      _
    $region15: #{tpu_custom_call.1} parent=1 // pred_check_branch
      %42 = sbr.rel (0) target = $region17
    $region16: #{tpu_custom_call.1} parent=1 // pred_region
      %43 = dma.done [#allocation3], 128
    $region17: #{tpu_custom_call.1} parent=1 // pred_fallthru
      _
    // Predicated region
    $region18: #{tpu_custom_call.1} parent=1 // pred_check
      _
    $region19: #{tpu_custom_call.1} parent=1 // pred_check_branch
      %45 = sbr.rel (0) target = $region21
    $region20: #{tpu_custom_call.1} parent=1 // pred_region
      %46 = dma.done [#allocation6], 128
    $region21: #{tpu_custom_call.1} parent=1 // pred_fallthru
      _
    // Predicated region
    $region22: #{tpu_custom_call.1} parent=1 // pred_check
      _
    $region23: #{tpu_custom_call.1} parent=1 // pred_check_branch
      %48 = sbr.rel (0) target = $region25
    $region24: #{tpu_custom_call.1} parent=1 // pred_region
      %49 = dma.done [#allocation6], 128
    $region25: #{tpu_custom_call.1} parent=1 // pred_fallthru
      _
    %v50 = vld [vmem:[#allocation2] sm:$0xff]
    %51 = vxpose.xlu0.b32.start [1/16] %v50, 128
    %52 = vxpose.xlu0.b32.cont [2/16] 0.0, 128
    %53 = vxpose.xlu0.b32.cont [3/16] 0.0, 128
    %54 = vxpose.xlu0.b32.cont [4/16] 0.0, 128
    %55 = vxpose.xlu0.b32.cont [5/16] 0.0, 128
    %56 = vxpose.xlu0.b32.cont [6/16] 0.0, 128
    %57 = vxpose.xlu0.b32.cont [7/16] 0.0, 128
    %58 = vxpose.xlu0.b32.cont [8/16] 0.0, 128
    %59 = vxpose.xlu0.b32.cont [9/16] 0.0, 128
    %60 = vxpose.xlu0.b32.cont [10/16] 0.0, 128
    %61 = vxpose.xlu0.b32.cont [11/16] 0.0, 128
    %62 = vxpose.xlu0.b32.cont [12/16] 0.0, 128
    %63 = vxpose.xlu0.b32.cont [13/16] 0.0, 128
    %64 = vxpose.xlu0.b32.cont [14/16] 0.0, 128
    %65 = vxpose.xlu0.b32.cont [15/16] 0.0, 128
    %66 = vxpose.xlu0.b32.end [16/16] 0.0, 128
    %v67 = vpop.trf.xlu0
    %v68 = vpop.trf.xlu0
    %v69 = vpop.trf.xlu0
    %v70 = vpop.trf.xlu0
    %v71 = vpop.trf.xlu0
    %v72 = vpop.trf.xlu0
    %v73 = vpop.trf.xlu0
    %v74 = vpop.trf.xlu0
    %v75 = vpop.trf.xlu0
    %v76 = vpop.trf.xlu0
    %v77 = vpop.trf.xlu0
    %v78 = vpop.trf.xlu0
    %v79 = vpop.trf.xlu0
    %v80 = vpop.trf.xlu0
    %v81 = vpop.trf.xlu0
    %v82 = vpop.trf.xlu0
    %v83 = vld [vmem:[#allocation5] sm:$0xff]
    %84 = vxpose.xlu0.b32.start [1/16] %v83, 128
    %85 = vxpose.xlu0.b32.cont [2/16] 0.0, 128
    %86 = vxpose.xlu0.b32.cont [3/16] 0.0, 128
    %87 = vxpose.xlu0.b32.cont [4/16] 0.0, 128
    %88 = vxpose.xlu0.b32.cont [5/16] 0.0, 128
    %89 = vxpose.xlu0.b32.cont [6/16] 0.0, 128
    %90 = vxpose.xlu0.b32.cont [7/16] 0.0, 128
    %91 = vxpose.xlu0.b32.cont [8/16] 0.0, 128
    %92 = vxpose.xlu0.b32.cont [9/16] 0.0, 128
    %93 = vxpose.xlu0.b32.cont [10/16] 0.0, 128
    %94 = vxpose.xlu0.b32.cont [11/16] 0.0, 128
    %95 = vxpose.xlu0.b32.cont [12/16] 0.0, 128
    %96 = vxpose.xlu0.b32.cont [13/16] 0.0, 128
    %97 = vxpose.xlu0.b32.cont [14/16] 0.0, 128
    %98 = vxpose.xlu0.b32.cont [15/16] 0.0, 128
    %99 = vxpose.xlu0.b32.end [16/16] 0.0, 128
    %v100 = vpop.trf.xlu0
    %v101 = vpop.trf.xlu0
    %v102 = vpop.trf.xlu0
    %v103 = vpop.trf.xlu0
    %v104 = vpop.trf.xlu0
    %v105 = vpop.trf.xlu0
    %v106 = vpop.trf.xlu0
    %v107 = vpop.trf.xlu0
    %v108 = vpop.trf.xlu0
    %v109 = vpop.trf.xlu0
    %v110 = vpop.trf.xlu0
    %v111 = vpop.trf.xlu0
    %v112 = vpop.trf.xlu0
    %v113 = vpop.trf.xlu0
    %v114 = vpop.trf.xlu0
    %v115 = vpop.trf.xlu0
    %v116 = vld [vmem:[#allocation7] sm:$0xff]
    %117 = vxpose.xlu0.b32.start [1/16] %v116, 128
    %118 = vxpose.xlu0.b32.cont [2/16] 0.0, 128
    %119 = vxpose.xlu0.b32.cont [3/16] 0.0, 128
    %120 = vxpose.xlu0.b32.cont [4/16] 0.0, 128
    %121 = vxpose.xlu0.b32.cont [5/16] 0.0, 128
    %122 = vxpose.xlu0.b32.cont [6/16] 0.0, 128
    %123 = vxpose.xlu0.b32.cont [7/16] 0.0, 128
    %124 = vxpose.xlu0.b32.cont [8/16] 0.0, 128
    %125 = vxpose.xlu0.b32.cont [9/16] 0.0, 128
    %126 = vxpose.xlu0.b32.cont [10/16] 0.0, 128
    %127 = vxpose.xlu0.b32.cont [11/16] 0.0, 128
    %128 = vxpose.xlu0.b32.cont [12/16] 0.0, 128
    %129 = vxpose.xlu0.b32.cont [13/16] 0.0, 128
    %130 = vxpose.xlu0.b32.cont [14/16] 0.0, 128
    %131 = vxpose.xlu0.b32.cont [15/16] 0.0, 128
    %132 = vxpose.xlu0.b32.end [16/16] 0.0, 128
    %v133 = vpop.trf.xlu0
    %v134 = vpop.trf.xlu0
    %v135 = vpop.trf.xlu0
    %v136 = vpop.trf.xlu0
    %v137 = vpop.trf.xlu0
    %v138 = vpop.trf.xlu0
    %v139 = vpop.trf.xlu0
    %v140 = vpop.trf.xlu0
    %v141 = vpop.trf.xlu0
    %v142 = vpop.trf.xlu0
    %v143 = vpop.trf.xlu0
    %v144 = vpop.trf.xlu0
    %v145 = vpop.trf.xlu0
    %v146 = vpop.trf.xlu0
    %v147 = vpop.trf.xlu0
    %v148 = vpop.trf.xlu0
    %v149 = vmul.f32 %v67, %v67
    %v150 = vmul.f32 %v68, %v68
    %vm151 = vcmask 64512
    %v152 = vsel %vm151, %v149, 0.0
    %v153 = vsel %vm151, %v150, 0.0
    %v154 = vadd.f32 %v152, %v153
    %v155 = vrot.slane %v154, 4
    %v156 = vadd.f32 %v154, %v155
    %v157 = vrot.slane %v156, 2
    %v158 = vadd.f32 %v156, %v157
    %v159 = vrot.slane %v158, 1
    %v160 = vadd.f32 %v158, %v159
    %v161 = vsub.f32 1.0, %v160
    %v162 = vmul.f32 %v100, %v100
    %v163 = vmul.f32 %v101, %v101
    %v164 = vsel %vm151, %v162, 0.0
    %v165 = vsel %vm151, %v163, 0.0
    %v166 = vadd.f32 %v164, %v165
    %v167 = vrot.slane %v166, 4
    %v168 = vadd.f32 %v166, %v167
    %v169 = vrot.slane %v168, 2
    %v170 = vadd.f32 %v168, %v169
    %v171 = vrot.slane %v170, 1
    %v172 = vadd.f32 %v170, %v171
    %v173 = vmul.f32 %v67, %v100
    %v174 = vmul.f32 %v68, %v101
    %v175 = vsel %vm151, %v173, 0.0
    %v176 = vsel %vm151, %v174, 0.0
    %v177 = vadd.f32 %v175, %v176
    %v178 = vrot.slane %v177, 4
    %v179 = vadd.f32 %v177, %v178
    %v180 = vrot.slane %v179, 2
    %v181 = vadd.f32 %v179, %v180
    %v182 = vrot.slane %v181, 1
    %v183 = vadd.f32 %v181, %v182
    %v184 = vsub.f32 %v67, %v100
    %v185 = vsub.f32 %v68, %v101
    %v186 = vmul.f32 %v184, %v184
    %v187 = vmul.f32 %v185, %v185
    %v188 = vsel %vm151, %v186, 0.0
    %v189 = vsel %vm151, %v187, 0.0
    %v190 = vadd.f32 %v188, %v189
    %v191 = vrot.slane %v190, 4
    %v192 = vadd.f32 %v190, %v191
    %v193 = vrot.slane %v192, 2
    %v194 = vadd.f32 %v192, %v193
    %v195 = vrot.slane %v194, 1
    %v196 = vadd.f32 %v194, %v195
    %v197 = vsub.f32 %v160, %v183
    %v198 = vmul.f32 %v161, %v161
    %v199 = vmul.f32 %v161, 2.0
    %v200 = vmul.f32 %v199, %v197
    %v201 = vadd.f32 %v198, %v200
    %v202 = vmul.f32 %v160, %v196
    %v203 = vadd.f32 %v201, %v202
    %v204 = vmul.f32 %v196, %v203
    %v205 = vmax.f32 %v204, 0.0
    %v206 = vmul.f32 %v183, 2.0
    %v207 = vsub.f32 1.0, %v206
    %v208 = vmul.f32 %v160, %v172
    %v209 = vadd.f32 %v207, %v208
    %v210 = vmax.f32 %v209, 1e-15
    %v211 = vrsqrt.pop %v205
    %v212 = vmul.f32 %v205, %v211
    %vm213 = vcmp.eq.f32.partialorder %v205, inf
    %v214 = vsel %vm213, %v205, %v212
    %vm215 = vcmp.eq.f32.partialorder %v205, 0.0
    %v216 = vand.u32 %v205, 2147483648
    %v217 = vsel %vm215, %v216, %v214
    %v218 = vrcp.pop %v210
    %v219 = vmul.f32 %v217, %v218
    %v220 = vmin.f32 %v219, 0.99999
    %v221 = vadd.f32 %v220, 1.0
    %v222 = vlog2.pop %v221
    %v223 = vmul.f32 %v222, 0.6931472
    %v224 = vmul.f32 -0.5, %v220
    %v225 = vadd.f32 %v224, 1.0
    %v226 = vmul.f32 %v225, %v220
    %v227 = vand.u32 2147483647, %v220
    %vm228 = vcmp.lt.f32.partialorder %v227, 0.0004427343
    %v229 = vsel %vm228, %v226, %v223
    %v230 = vsub.f32 0.0, %v220
    %v231 = vadd.f32 %v230, 1.0
    %v232 = vlog2.pop %v231
    %v233 = vmul.f32 %v232, 0.6931472
    %v234 = vmul.f32 -0.5, %v230
    %v235 = vadd.f32 %v234, 1.0
    %v236 = vmul.f32 %v235, %v230
    %v237 = vand.u32 2147483647, %v230
    %vm238 = vcmp.lt.f32.partialorder %v237, 0.0004427343
    %v239 = vsel %vm238, %v236, %v233
    %v240 = vsub.f32 %v229, %v239
    %v241 = vmul.f32 %v133, %v133
    %v242 = vmul.f32 %v134, %v134
    %v243 = vsel %vm151, %v241, 0.0
    %v244 = vsel %vm151, %v242, 0.0
    %v245 = vadd.f32 %v243, %v244
    %v246 = vrot.slane %v245, 4
    %v247 = vadd.f32 %v245, %v246
    %v248 = vrot.slane %v247, 2
    %v249 = vadd.f32 %v247, %v248
    %v250 = vrot.slane %v249, 1
    %v251 = vadd.f32 %v249, %v250
    %v252 = vmul.f32 %v67, %v133
    %v253 = vmul.f32 %v68, %v134
    %v254 = vsel %vm151, %v252, 0.0
    %v255 = vsel %vm151, %v253, 0.0
    %v256 = vadd.f32 %v254, %v255
    %v257 = vrot.slane %v256, 4
    %v258 = vadd.f32 %v256, %v257
    %v259 = vrot.slane %v258, 2
    %v260 = vadd.f32 %v258, %v259
    %v261 = vrot.slane %v260, 1
    %v262 = vadd.f32 %v260, %v261
    %v263 = vsub.f32 %v67, %v133
    %v264 = vsub.f32 %v68, %v134
    %v265 = vmul.f32 %v263, %v263
    %v266 = vmul.f32 %v264, %v264
    %v267 = vsel %vm151, %v265, 0.0
    %v268 = vsel %vm151, %v266, 0.0
    %v269 = vadd.f32 %v267, %v268
    %v270 = vrot.slane %v269, 4
    %v271 = vadd.f32 %v269, %v270
    %v272 = vrot.slane %v271, 2
    %v273 = vadd.f32 %v271, %v272
    %v274 = vrot.slane %v273, 1
    %v275 = vadd.f32 %v273, %v274
    %v276 = vsub.f32 %v160, %v262
    %v277 = vmul.f32 %v199, %v276
    %v278 = vadd.f32 %v198, %v277
    %v279 = vmul.f32 %v160, %v275
    %v280 = vadd.f32 %v278, %v279
    %v281 = vmul.f32 %v275, %v280
    %v282 = vmax.f32 %v281, 0.0
    %v283 = vmul.f32 %v262, 2.0
    %v284 = vsub.f32 1.0, %v283
    %v285 = vmul.f32 %v160, %v251
    %v286 = vadd.f32 %v284, %v285
    %v287 = vmax.f32 %v286, 1e-15
    %v288 = vrsqrt.pop %v282
    %v289 = vmul.f32 %v282, %v288
    %vm290 = vcmp.eq.f32.partialorder %v282, inf
    %v291 = vsel %vm290, %v282, %v289
    %vm292 = vcmp.eq.f32.partialorder %v282, 0.0
    %v293 = vand.u32 %v282, 2147483648
    %v294 = vsel %vm292, %v293, %v291
    %v295 = vrcp.pop %v287
    %v296 = vmul.f32 %v294, %v295
    %v297 = vmin.f32 %v296, 0.99999
    %v298 = vadd.f32 %v297, 1.0
    %v299 = vlog2.pop %v298
    %v300 = vmul.f32 %v299, 0.6931472
    %v301 = vmul.f32 -0.5, %v297
    %v302 = vadd.f32 %v301, 1.0
    %v303 = vmul.f32 %v302, %v297
    %v304 = vand.u32 2147483647, %v297
    %vm305 = vcmp.lt.f32.partialorder %v304, 0.0004427343
    %v306 = vsel %vm305, %v303, %v300
    %v307 = vsub.f32 0.0, %v297
    %v308 = vadd.f32 %v307, 1.0
    %v309 = vlog2.pop %v308
    %v310 = vmul.f32 %v309, 0.6931472
    %v311 = vmul.f32 -0.5, %v307
    %v312 = vadd.f32 %v311, 1.0
    %v313 = vmul.f32 %v312, %v307
    %v314 = vand.u32 2147483647, %v307
    %vm315 = vcmp.lt.f32.partialorder %v314, 0.0004427343
    %v316 = vsel %vm315, %v313, %v310
    %v317 = vsub.f32 %v306, %v316
    %v318 = vsub.f32 %v240, %v317
    %v319 = vadd.f32 %v318, 0.2
    %v320 = vmax.f32 %v319, 0.0
    %v321 = vlaneseq
    %v322 = vand.u32 %v321, 127
    %s323 = smul.u32 0, 8
    %v324 = vstv %s323
    %v325 = vadd.s32 %v324, %v322
    %vm326 = vcmp.lt.s32.totalorder %v325, 8
    %v327 = vsel %vm326, %v320, 0.0
    %vm328 = vcmask 57344
    %v329 = vsel %vm328, %v327, 0.0
    %330 = vadd.xlane.f32.xlu0 %v329
    %v331 = vpop.xlane.xlu0 %330
    %v332 = vrot.slane %v331, 4
    %v333 = vadd.f32 %v331, %v332
    %v334 = vrot.slane %v333, 2
    %v335 = vadd.f32 %v333, %v334
    %v336 = vrot.slane %v335, 1
    %v337 = vadd.f32 %v335, %v336
    %s338 = vtos %v337
    %v339 = vstv %s338
    %340 = vst [vmem:[#allocation8] sm:$0xff] %v339
    // Predicated region
    $region26: #{tpu_custom_call.1} parent=1 // pred_check
      _
    $region27: #{tpu_custom_call.1} parent=1 // pred_check_branch
      %342 = sbr.rel (0) target = $region29
    $region28: #{tpu_custom_call.1} parent=1 // pred_region
      %s344 = ssub.s32 128, 128
      %345 = vsyncadd [#allocation4], %s344
      %s347 = sshll.u32 [#allocation8], 4
      %s348 = int_to_ptr.vmem [resolvable:$true] %s347
      %350 = dma.vmem_to_hbm [thread:$0]  %s348, 128, %s3, [#allocation4]
    $region29: #{tpu_custom_call.1} parent=1 // pred_fallthru
      _
    // Predicated region
    $region30: #{tpu_custom_call.1} parent=1 // pred_check
      _
    $region31: #{tpu_custom_call.1} parent=1 // pred_check_branch
      %352 = sbr.rel (0) target = $region33
    $region32: #{tpu_custom_call.1} parent=1 // pred_region
      %353 = dma.done [#allocation4], 128
    $region33: #{tpu_custom_call.1} parent=1 // pred_fallthru
      _
    %354 = vsyncpa [#allocation3], 1
    %355 = vsyncpa [#allocation6], 1
    %356 = vsyncpa [#allocation4], 1

</llo_original>
